<compile_context>
chip_gen: v7x
topology: tpu7x:2x2x1
jax: 0.10.0
libtpu: 0.0.40
codegen_flags: <defaults>
</compile_context>

<pallas_src>
import math

import jax
import jax.numpy as jnp
from jax.experimental import pallas as pl
from jax.experimental.pallas import tpu as pltpu

# ---------------- small config (consistent with TransformerConfig) ----------------
BATCH = 2
SEQ = 8                     # seq_length (<= block_size)
EMB = 32                    # embedding_dim
N_HEAD = 4
HEAD_DIM = EMB // N_HEAD    # 8
HIDDEN = 4 * EMB            # FFN hidden
EPS = 1e-5                  # nn.LayerNorm default eps

N_FLAT = BATCH * SEQ        # 16 rows (batch flattened)
NR = N_HEAD * N_FLAT        # 64 rows (heads stacked on top of the batch-flattened rows)


def _layernorm(x, gamma, beta):
    # x: (N, E); gamma/beta: (1, E); population variance (PyTorch LayerNorm)
    mean = jnp.mean(x, axis=-1, keepdims=True)
    var = jnp.mean((x - mean) ** 2, axis=-1, keepdims=True)
    return (x - mean) * jax.lax.rsqrt(var + EPS) * gamma + beta


def _gelu_exact(x):
    # torch.nn.GELU() default: exact erf formulation
    return 0.5 * x * (1.0 + jax.lax.erf(x * (1.0 / math.sqrt(2.0))))


def decoder_block_kernel(
    x_ref,
    ln1_g_ref, ln1_b_ref,
    wqkv_ref, bqkv_ref,
    wo_ref, bo_ref,
    ln2_g_ref, ln2_b_ref,
    w1_ref, b1_ref, w2_ref, b2_ref,
    attn_bias_ref, head_mask_ref,
    o_ref,
):
    x = x_ref[...]                                               # (N_FLAT, E)

    # ---- LN1 + fused QKV projection (one (E, 3E) matmul) ----
    y = _layernorm(x, ln1_g_ref[...], ln1_b_ref[...])
    qkv = jnp.dot(y, wqkv_ref[...], preferred_element_type=jnp.float32) + bqkv_ref[...]
    q = qkv[:, 0:EMB]             # 1/sqrt(head_dim) already folded into wq/bq at pack time
    k = qkv[:, EMB:2 * EMB]
    v = qkv[:, 2 * EMB:3 * EMB]

    # ---- all heads in one pair of matmuls over head-stacked rows ----
    # head_mask is a (NR, E) block-diagonal lane mask: row block h keeps lanes
    # [h*HEAD_DIM, (h+1)*HEAD_DIM).  Masking K restricts the 32-lane contraction to
    # the matching head's lanes; masking V keeps each head's output in its own lanes.
    hmask = head_mask_ref[...]
    q4 = jnp.concatenate([q] * N_HEAD, axis=0)                   # (NR, E)
    k4 = jnp.concatenate([k] * N_HEAD, axis=0) * hmask
    v4 = jnp.concatenate([v] * N_HEAD, axis=0) * hmask

    # Transpose-free QK^T: contract lane dim of both operands.
    s = jax.lax.dot_general(q4, k4, (((1,), (1,)), ((), ())),
                            preferred_element_type=jnp.float32)  # (NR, NR)
    # Precomputed additive bias: 0 where (same head & same batch & causal), else -1e30.
    s = s + attn_bias_ref[...]

    # Single packed softmax (masked entries underflow to exactly 0 after exp).
    s = s - jnp.max(s, axis=-1, keepdims=True)
    p = jnp.exp(s)
    p = p / jnp.sum(p, axis=-1, keepdims=True)                   # exact divide

    o4 = jnp.dot(p, v4, preferred_element_type=jnp.float32)      # (NR, E)
    # Row block h holds head h's output in lanes [h*HD,(h+1)*HD) and exact zeros
    # elsewhere, so summing the row blocks reconstructs the concatenated-head layout.
    att = o4[0:N_FLAT]
    for h in range(1, N_HEAD):
        att = att + o4[h * N_FLAT:(h + 1) * N_FLAT]

    att = jnp.dot(att, wo_ref[...], preferred_element_type=jnp.float32) + bo_ref[...]
    x1 = x + att                                                 # residual 1

    # ---- LN2 + FFN ----
    y2 = _layernorm(x1, ln2_g_ref[...], ln2_b_ref[...])
    h1 = jnp.dot(y2, w1_ref[...], preferred_element_type=jnp.float32) + b1_ref[...]
    h1 = _gelu_exact(h1)
    h2 = jnp.dot(h1, w2_ref[...], preferred_element_type=jnp.float32) + b2_ref[...]
    o_ref[...] = x1 + h2                                         # residual 2


# Order in which packed params are fed to the kernel (must match kernel signature).
_PACKED_ORDER = (
    "ln1_g", "ln1_b",
    "wqkv", "bqkv",
    "wo", "bo",
    "ln2_g", "ln2_b",
    "w1", "b1", "w2", "b2",
    "attn_bias", "head_mask",
)


def pack_decoder_params(p):
    """One-time host-side packing (NOT on the per-call forward path)."""
    scale = 1.0 / math.sqrt(HEAD_DIM)
    wqkv = jnp.concatenate([p["wq"] * scale, p["wk"], p["wv"]], axis=1)       # (E, 3E)
    bqkv = jnp.concatenate([p["bq"] * scale, p["bk"], p["bv"]]).reshape(1, 3 * EMB)

    # Additive attention bias over head-stacked, batch-flattened rows.
    r = jnp.arange(NR)
    head = r // N_FLAT
    tok = r % N_FLAT
    batch = tok // SEQ
    pos = tok % SEQ
    allowed = ((head[:, None] == head[None, :]) &
               (batch[:, None] == batch[None, :]) &
               (pos[None, :] <= pos[:, None]))
    attn_bias = jnp.where(allowed, 0.0, -1e30).astype(jnp.float32)            # (NR, NR)

    # Block-diagonal head-lane mask for K / V.
    lane = jnp.arange(EMB)
    head_mask = (head[:, None] == (lane[None, :] // HEAD_DIM)).astype(jnp.float32)  # (NR, E)

    return {
        "ln1_g": p["ln1_g"].reshape(1, EMB),
        "ln1_b": p["ln1_b"].reshape(1, EMB),
        "wqkv": wqkv,
        "bqkv": bqkv,
        "wo": p["wo"],
        "bo": p["bo"].reshape(1, EMB),
        "ln2_g": p["ln2_g"].reshape(1, EMB),
        "ln2_b": p["ln2_b"].reshape(1, EMB),
        "w1": p["w1"],
        "b1": p["b1"].reshape(1, HIDDEN),
        "w2": p["w2"],
        "b2": p["b2"].reshape(1, EMB),
        "attn_bias": attn_bias,
        "head_mask": head_mask,
    }


def decoder_block(x, packed):
    B, S, E = x.shape
    assert (B, S, E) == (BATCH, SEQ, EMB)
    x_flat = x.reshape(N_FLAT, EMB)   # contiguous flatten, no data movement

    def full(shape):
        return pl.BlockSpec(shape, lambda g, _z=tuple(0 for _ in shape): _z)

    args = [x_flat] + [packed[name] for name in _PACKED_ORDER]
    in_specs = [pl.BlockSpec((N_FLAT, EMB), lambda g: (0, 0))]
    in_specs += [full(tuple(packed[name].shape)) for name in _PACKED_ORDER]

    # Single invocation on all generations (v5e/v6e single-TC; on v7x the 2-TC batch
    # split duplicates weight DMA + per-step overhead for zero MXU-throughput gain
    # at B=2, so it is intentionally not used).
    out_flat = pl.pallas_call(
        decoder_block_kernel,
        out_shape=jax.ShapeDtypeStruct((N_FLAT, EMB), jnp.float32),
        grid_spec=pltpu.PrefetchScalarGridSpec(
            num_scalar_prefetch=0,
            grid=(1,),
            in_specs=in_specs,
            out_specs=pl.BlockSpec((N_FLAT, EMB), lambda g: (0, 0)),
        ),
        compiler_params=pltpu.CompilerParams(
            dimension_semantics=("arbitrary",)),
    )(*args)
    return out_flat.reshape(B, S, E)


# ---------------- pure-JAX reference (for a correctness sanity check) ----------------
def decoder_block_ref(x, p):
    def ln(v, g, b):
        m = jnp.mean(v, axis=-1, keepdims=True)
        var = jnp.mean((v - m) ** 2, axis=-1, keepdims=True)
        return (v - m) / jnp.sqrt(var + EPS) * g + b

    y = ln(x, p["ln1_g"], p["ln1_b"])
    q = y @ p["wq"] + p["bq"]
    k = y @ p["wk"] + p["bk"]
    v = y @ p["wv"] + p["bv"]
    S = x.shape[1]
    mask = jnp.tril(jnp.ones((S, S), bool))
    outs = []
    for h in range(N_HEAD):
        lo, hi = h * HEAD_DIM, (h + 1) * HEAD_DIM
        s = q[:, :, lo:hi] @ jnp.swapaxes(k[:, :, lo:hi], -1, -2)
        s = jnp.where(mask, s, -jnp.inf) / math.sqrt(HEAD_DIM)
        p_att = jax.nn.softmax(s, axis=-1)
        outs.append(p_att @ v[:, :, lo:hi])
    att = jnp.concatenate(outs, axis=-1) @ p["wo"] + p["bo"]
    x1 = x + att
    y2 = ln(x1, p["ln2_g"], p["ln2_b"])
    pre = y2 @ p["w1"] + p["b1"]
    h1 = 0.5 * pre * (1.0 + jax.lax.erf(pre / math.sqrt(2.0)))
    return x1 + (h1 @ p["w2"] + p["b2"])


def init_params(key):
    ks = jax.random.split(key, 12)
    n = lambda k, shape: (0.02 * jax.random.normal(k, shape)).astype(jnp.float32)
    return {
        "ln1_g": jnp.ones((EMB,), jnp.float32),
        "ln1_b": jnp.zeros((EMB,), jnp.float32),
        "wq": n(ks[0], (EMB, EMB)), "bq": n(ks[1], (EMB,)),
        "wk": n(ks[2], (EMB, EMB)), "bk": n(ks[3], (EMB,)),
        "wv": n(ks[4], (EMB, EMB)), "bv": n(ks[5], (EMB,)),
        "wo": n(ks[6], (EMB, EMB)), "bo": n(ks[7], (EMB,)),
        "ln2_g": jnp.ones((EMB,), jnp.float32),
        "ln2_b": jnp.zeros((EMB,), jnp.float32),
        "w1": n(ks[8], (EMB, HIDDEN)), "b1": n(ks[9], (HIDDEN,)),
        "w2": n(ks[10], (HIDDEN, EMB)), "b2": n(ks[11], (EMB,)),
    }


if __name__ == "__main__":
    key = jax.random.PRNGKey(0)
    kx, kp = jax.random.split(key)
    x = jax.random.normal(kx, (BATCH, SEQ, EMB), jnp.float32)
    params = init_params(kp)

    packed = pack_decoder_params(params)       # one-time packing, off the forward path

    out = decoder_block(x, packed)
    out = jax.block_until_ready(out)

    ref = decoder_block_ref(x, params)
    assert out.shape == (BATCH, SEQ, EMB)
    assert jnp.allclose(out, ref, atol=2e-4, rtol=2e-4), "mismatch vs pure-JAX reference"
    print("KERNEL_OK")
</pallas_src>

<mosaic_0001>
module attributes {stable_mosaic.version = 11 : i64} {
  func.func @decoder_block_kernel(%arg0: i32, %arg1: memref<16x32xf32, #tpu.memory_space<vmem>>, %arg2: memref<1x32xf32, #tpu.memory_space<vmem>>, %arg3: memref<1x32xf32, #tpu.memory_space<vmem>>, %arg4: memref<32x96xf32, #tpu.memory_space<vmem>>, %arg5: memref<1x96xf32, #tpu.memory_space<vmem>>, %arg6: memref<32x32xf32, #tpu.memory_space<vmem>>, %arg7: memref<1x32xf32, #tpu.memory_space<vmem>>, %arg8: memref<1x32xf32, #tpu.memory_space<vmem>>, %arg9: memref<1x32xf32, #tpu.memory_space<vmem>>, %arg10: memref<32x128xf32, #tpu.memory_space<vmem>>, %arg11: memref<1x128xf32, #tpu.memory_space<vmem>>, %arg12: memref<128x32xf32, #tpu.memory_space<vmem>>, %arg13: memref<1x32xf32, #tpu.memory_space<vmem>>, %arg14: memref<64x64xf32, #tpu.memory_space<vmem>>, %arg15: memref<64x32xf32, #tpu.memory_space<vmem>>, %arg16: memref<16x32xf32, #tpu.memory_space<vmem>>) attributes {dimension_semantics = [#tpu.dimension_semantics<arbitrary>], iteration_bounds = array<i64: 1>, scalar_prefetch = 0 : i64, scratch_operands = 0 : i64, tpu.core_type = #tpu.core_type<tc>, window_params = [{pipeline_mode = #tpu.pipeline_mode<synchronous>, transform_indices = @transform_0, window_bounds = array<i64: 16, 32>}, {pipeline_mode = #tpu.pipeline_mode<synchronous>, transform_indices = @transform_1, window_bounds = array<i64: 1, 32>}, {pipeline_mode = #tpu.pipeline_mode<synchronous>, transform_indices = @transform_2, window_bounds = array<i64: 1, 32>}, {pipeline_mode = #tpu.pipeline_mode<synchronous>, transform_indices = @transform_3, window_bounds = array<i64: 32, 96>}, {pipeline_mode = #tpu.pipeline_mode<synchronous>, transform_indices = @transform_4, window_bounds = array<i64: 1, 96>}, {pipeline_mode = #tpu.pipeline_mode<synchronous>, transform_indices = @transform_5, window_bounds = array<i64: 32, 32>}, {pipeline_mode = #tpu.pipeline_mode<synchronous>, transform_indices = @transform_6, window_bounds = array<i64: 1, 32>}, {pipeline_mode = #tpu.pipeline_mode<synchronous>, transform_indices = @transform_7, window_bounds = array<i64: 1, 32>}, {pipeline_mode = #tpu.pipeline_mode<synchronous>, transform_indices = @transform_8, window_bounds = array<i64: 1, 32>}, {pipeline_mode = #tpu.pipeline_mode<synchronous>, transform_indices = @transform_9, window_bounds = array<i64: 32, 128>}, {pipeline_mode = #tpu.pipeline_mode<synchronous>, transform_indices = @transform_10, window_bounds = array<i64: 1, 128>}, {pipeline_mode = #tpu.pipeline_mode<synchronous>, transform_indices = @transform_11, window_bounds = array<i64: 128, 32>}, {pipeline_mode = #tpu.pipeline_mode<synchronous>, transform_indices = @transform_12, window_bounds = array<i64: 1, 32>}, {pipeline_mode = #tpu.pipeline_mode<synchronous>, transform_indices = @transform_13, window_bounds = array<i64: 64, 64>}, {pipeline_mode = #tpu.pipeline_mode<synchronous>, transform_indices = @transform_14, window_bounds = array<i64: 64, 32>}, {pipeline_mode = #tpu.pipeline_mode<synchronous>, transform_indices = @transform_15, window_bounds = array<i64: 16, 32>}]} {
    %c0 = arith.constant 0 : index
    %c0_0 = arith.constant 0 : index
    %0 = vector.load %arg1[%c0, %c0_0] : memref<16x32xf32, #tpu.memory_space<vmem>>, vector<16x32xf32>
    %c0_1 = arith.constant 0 : index
    %c0_2 = arith.constant 0 : index
    %1 = vector.load %arg2[%c0_1, %c0_2] : memref<1x32xf32, #tpu.memory_space<vmem>>, vector<1x32xf32>
    %c0_3 = arith.constant 0 : index
    %c0_4 = arith.constant 0 : index
    %2 = vector.load %arg3[%c0_3, %c0_4] : memref<1x32xf32, #tpu.memory_space<vmem>>, vector<1x32xf32>
    %cst = arith.constant dense<0.000000e+00> : vector<16xf32>
    %3 = vector.multi_reduction <add>, %0, %cst [1] : vector<16x32xf32> to vector<16xf32>
    %4 = vector.shape_cast %3 : vector<16xf32> to vector<16x1xf32>
    %cst_5 = arith.constant 3.200000e+01 : f32
    %5 = vector.broadcast %cst_5 : f32 to vector<16x1xf32>
    %6 = arith.divf %4, %5 : vector<16x1xf32>
    %7 = vector.broadcast %6 : vector<16x1xf32> to vector<16x32xf32>
    %8 = arith.subf %0, %7 : vector<16x32xf32>
    %9 = arith.mulf %8, %8 : vector<16x32xf32>
    %cst_6 = arith.constant dense<0.000000e+00> : vector<16xf32>
    %10 = vector.multi_reduction <add>, %9, %cst_6 [1] : vector<16x32xf32> to vector<16xf32>
    %11 = vector.shape_cast %10 : vector<16xf32> to vector<16x1xf32>
    %cst_7 = arith.constant 3.200000e+01 : f32
    %12 = vector.broadcast %cst_7 : f32 to vector<16x1xf32>
    %13 = arith.divf %11, %12 : vector<16x1xf32>
    %14 = vector.broadcast %6 : vector<16x1xf32> to vector<16x32xf32>
    %15 = arith.subf %0, %14 : vector<16x32xf32>
    %cst_8 = arith.constant 9.99999974E-6 : f32
    %16 = vector.broadcast %cst_8 : f32 to vector<16x1xf32>
    %17 = arith.addf %13, %16 : vector<16x1xf32>
    %18 = math.rsqrt %17 : vector<16x1xf32>
    %19 = vector.broadcast %18 : vector<16x1xf32> to vector<16x32xf32>
    %20 = arith.mulf %15, %19 : vector<16x32xf32>
    %21 = vector.broadcast %1 : vector<1x32xf32> to vector<16x32xf32>
    %22 = arith.mulf %20, %21 : vector<16x32xf32>
    %23 = vector.broadcast %2 : vector<1x32xf32> to vector<16x32xf32>
    %24 = arith.addf %22, %23 : vector<16x32xf32>
    %c0_9 = arith.constant 0 : index
    %c0_10 = arith.constant 0 : index
    %25 = vector.load %arg4[%c0_9, %c0_10] : memref<32x96xf32, #tpu.memory_space<vmem>>, vector<32x96xf32>
    %cst_11 = arith.constant dense<0.000000e+00> : vector<16x96xf32>
    %26 = tpu.matmul %24, %25, %cst_11 {dimension_numbers = #tpu.dot_dimension_numbers<[1], [0], [0], [1], [0, 0, 1, 1], [], []>} : vector<16x32xf32>, vector<32x96xf32>, vector<16x96xf32> -> vector<16x96xf32>
    %c0_12 = arith.constant 0 : index
    %c0_13 = arith.constant 0 : index
    %27 = vector.load %arg5[%c0_12, %c0_13] : memref<1x96xf32, #tpu.memory_space<vmem>>, vector<1x96xf32>
    %28 = vector.broadcast %27 : vector<1x96xf32> to vector<16x96xf32>
    %29 = arith.addf %26, %28 : vector<16x96xf32>
    %30 = vector.extract_strided_slice %29 {offsets = [0, 0], sizes = [16, 32], strides = [1, 1]} : vector<16x96xf32> to vector<16x32xf32>
    %31 = vector.extract_strided_slice %29 {offsets = [0, 32], sizes = [16, 32], strides = [1, 1]} : vector<16x96xf32> to vector<16x32xf32>
    %32 = vector.extract_strided_slice %29 {offsets = [0, 64], sizes = [16, 32], strides = [1, 1]} : vector<16x96xf32> to vector<16x32xf32>
    %c0_14 = arith.constant 0 : index
    %c0_15 = arith.constant 0 : index
    %33 = vector.load %arg15[%c0_14, %c0_15] : memref<64x32xf32, #tpu.memory_space<vmem>>, vector<64x32xf32>
    %34 = tpu.concatenate %30, %30, %30, %30 in 0 : vector<16x32xf32>, vector<16x32xf32>, vector<16x32xf32>, vector<16x32xf32> -> vector<64x32xf32>
    %35 = tpu.concatenate %31, %31, %31, %31 in 0 : vector<16x32xf32>, vector<16x32xf32>, vector<16x32xf32>, vector<16x32xf32> -> vector<64x32xf32>
    %36 = arith.mulf %35, %33 : vector<64x32xf32>
    %37 = tpu.concatenate %32, %32, %32, %32 in 0 : vector<16x32xf32>, vector<16x32xf32>, vector<16x32xf32>, vector<16x32xf32> -> vector<64x32xf32>
    %38 = arith.mulf %37, %33 : vector<64x32xf32>
    %cst_16 = arith.constant dense<0.000000e+00> : vector<64x64xf32>
    %39 = tpu.matmul %34, %36, %cst_16 {dimension_numbers = #tpu.dot_dimension_numbers<[1], [1], [0], [0], [0, 0, 1, 0], [], []>} : vector<64x32xf32>, vector<64x32xf32>, vector<64x64xf32> -> vector<64x64xf32>
    %c0_17 = arith.constant 0 : index
    %c0_18 = arith.constant 0 : index
    %40 = vector.load %arg14[%c0_17, %c0_18] : memref<64x64xf32, #tpu.memory_space<vmem>>, vector<64x64xf32>
    %41 = arith.addf %39, %40 : vector<64x64xf32>
    %cst_19 = arith.constant dense<0xFF800000> : vector<64xf32>
    %42 = vector.multi_reduction <maximumf>, %41, %cst_19 [1] : vector<64x64xf32> to vector<64xf32>
    %43 = vector.shape_cast %42 : vector<64xf32> to vector<64x1xf32>
    %44 = vector.broadcast %43 : vector<64x1xf32> to vector<64x64xf32>
    %45 = arith.subf %41, %44 : vector<64x64xf32>
    %46 = math.exp %45 : vector<64x64xf32>
    %cst_20 = arith.constant dense<0.000000e+00> : vector<64xf32>
    %47 = vector.multi_reduction <add>, %46, %cst_20 [1] : vector<64x64xf32> to vector<64xf32>
    %48 = vector.shape_cast %47 : vector<64xf32> to vector<64x1xf32>
    %49 = vector.broadcast %48 : vector<64x1xf32> to vector<64x64xf32>
    %50 = arith.divf %46, %49 : vector<64x64xf32>
    %cst_21 = arith.constant dense<0.000000e+00> : vector<64x32xf32>
    %51 = tpu.matmul %50, %38, %cst_21 {dimension_numbers = #tpu.dot_dimension_numbers<[1], [0], [0], [1], [0, 0, 1, 1], [], []>} : vector<64x64xf32>, vector<64x32xf32>, vector<64x32xf32> -> vector<64x32xf32>
    %52 = vector.extract_strided_slice %51 {offsets = [0, 0], sizes = [16, 32], strides = [1, 1]} : vector<64x32xf32> to vector<16x32xf32>
    %53 = vector.extract_strided_slice %51 {offsets = [16, 0], sizes = [16, 32], strides = [1, 1]} : vector<64x32xf32> to vector<16x32xf32>
    %54 = arith.addf %52, %53 : vector<16x32xf32>
    %55 = vector.extract_strided_slice %51 {offsets = [32, 0], sizes = [16, 32], strides = [1, 1]} : vector<64x32xf32> to vector<16x32xf32>
    %56 = arith.addf %54, %55 : vector<16x32xf32>
    %57 = vector.extract_strided_slice %51 {offsets = [48, 0], sizes = [16, 32], strides = [1, 1]} : vector<64x32xf32> to vector<16x32xf32>
    %58 = arith.addf %56, %57 : vector<16x32xf32>
    %c0_22 = arith.constant 0 : index
    %c0_23 = arith.constant 0 : index
    %59 = vector.load %arg6[%c0_22, %c0_23] : memref<32x32xf32, #tpu.memory_space<vmem>>, vector<32x32xf32>
    %cst_24 = arith.constant dense<0.000000e+00> : vector<16x32xf32>
    %60 = tpu.matmul %58, %59, %cst_24 {dimension_numbers = #tpu.dot_dimension_numbers<[1], [0], [0], [1], [0, 0, 1, 1], [], []>} : vector<16x32xf32>, vector<32x32xf32>, vector<16x32xf32> -> vector<16x32xf32>
    %c0_25 = arith.constant 0 : index
    %c0_26 = arith.constant 0 : index
    %61 = vector.load %arg7[%c0_25, %c0_26] : memref<1x32xf32, #tpu.memory_space<vmem>>, vector<1x32xf32>
    %62 = vector.broadcast %61 : vector<1x32xf32> to vector<16x32xf32>
    %63 = arith.addf %60, %62 : vector<16x32xf32>
    %64 = arith.addf %0, %63 : vector<16x32xf32>
    %c0_27 = arith.constant 0 : index
    %c0_28 = arith.constant 0 : index
    %65 = vector.load %arg8[%c0_27, %c0_28] : memref<1x32xf32, #tpu.memory_space<vmem>>, vector<1x32xf32>
    %c0_29 = arith.constant 0 : index
    %c0_30 = arith.constant 0 : index
    %66 = vector.load %arg9[%c0_29, %c0_30] : memref<1x32xf32, #tpu.memory_space<vmem>>, vector<1x32xf32>
    %cst_31 = arith.constant dense<0.000000e+00> : vector<16xf32>
    %67 = vector.multi_reduction <add>, %64, %cst_31 [1] : vector<16x32xf32> to vector<16xf32>
    %68 = vector.shape_cast %67 : vector<16xf32> to vector<16x1xf32>
    %cst_32 = arith.constant 3.200000e+01 : f32
    %69 = vector.broadcast %cst_32 : f32 to vector<16x1xf32>
    %70 = arith.divf %68, %69 : vector<16x1xf32>
    %71 = vector.broadcast %70 : vector<16x1xf32> to vector<16x32xf32>
    %72 = arith.subf %64, %71 : vector<16x32xf32>
    %73 = arith.mulf %72, %72 : vector<16x32xf32>
    %cst_33 = arith.constant dense<0.000000e+00> : vector<16xf32>
    %74 = vector.multi_reduction <add>, %73, %cst_33 [1] : vector<16x32xf32> to vector<16xf32>
    %75 = vector.shape_cast %74 : vector<16xf32> to vector<16x1xf32>
    %cst_34 = arith.constant 3.200000e+01 : f32
    %76 = vector.broadcast %cst_34 : f32 to vector<16x1xf32>
    %77 = arith.divf %75, %76 : vector<16x1xf32>
    %78 = vector.broadcast %70 : vector<16x1xf32> to vector<16x32xf32>
    %79 = arith.subf %64, %78 : vector<16x32xf32>
    %cst_35 = arith.constant 9.99999974E-6 : f32
    %80 = vector.broadcast %cst_35 : f32 to vector<16x1xf32>
    %81 = arith.addf %77, %80 : vector<16x1xf32>
    %82 = math.rsqrt %81 : vector<16x1xf32>
    %83 = vector.broadcast %82 : vector<16x1xf32> to vector<16x32xf32>
    %84 = arith.mulf %79, %83 : vector<16x32xf32>
    %85 = vector.broadcast %65 : vector<1x32xf32> to vector<16x32xf32>
    %86 = arith.mulf %84, %85 : vector<16x32xf32>
    %87 = vector.broadcast %66 : vector<1x32xf32> to vector<16x32xf32>
    %88 = arith.addf %86, %87 : vector<16x32xf32>
    %c0_36 = arith.constant 0 : index
    %c0_37 = arith.constant 0 : index
    %89 = vector.load %arg10[%c0_36, %c0_37] : memref<32x128xf32, #tpu.memory_space<vmem>>, vector<32x128xf32>
    %cst_38 = arith.constant dense<0.000000e+00> : vector<16x128xf32>
    %90 = tpu.matmul %88, %89, %cst_38 {dimension_numbers = #tpu.dot_dimension_numbers<[1], [0], [0], [1], [0, 0, 1, 1], [], []>} : vector<16x32xf32>, vector<32x128xf32>, vector<16x128xf32> -> vector<16x128xf32>
    %c0_39 = arith.constant 0 : index
    %c0_40 = arith.constant 0 : index
    %91 = vector.load %arg11[%c0_39, %c0_40] : memref<1x128xf32, #tpu.memory_space<vmem>>, vector<1x128xf32>
    %92 = vector.broadcast %91 : vector<1x128xf32> to vector<16x128xf32>
    %93 = arith.addf %90, %92 : vector<16x128xf32>
    %cst_41 = arith.constant 5.000000e-01 : f32
    %94 = vector.broadcast %cst_41 : f32 to vector<16x128xf32>
    %95 = arith.mulf %94, %93 : vector<16x128xf32>
    %cst_42 = arith.constant 0.707106769 : f32
    %96 = vector.broadcast %cst_42 : f32 to vector<16x128xf32>
    %97 = arith.mulf %93, %96 : vector<16x128xf32>
    %98 = math.erf %97 : vector<16x128xf32>
    %cst_43 = arith.constant 1.000000e+00 : f32
    %99 = vector.broadcast %cst_43 : f32 to vector<16x128xf32>
    %100 = arith.addf %99, %98 : vector<16x128xf32>
    %101 = arith.mulf %95, %100 : vector<16x128xf32>
    %c0_44 = arith.constant 0 : index
    %c0_45 = arith.constant 0 : index
    %102 = vector.load %arg12[%c0_44, %c0_45] : memref<128x32xf32, #tpu.memory_space<vmem>>, vector<128x32xf32>
    %cst_46 = arith.constant dense<0.000000e+00> : vector<16x32xf32>
    %103 = tpu.matmul %101, %102, %cst_46 {dimension_numbers = #tpu.dot_dimension_numbers<[1], [0], [0], [1], [0, 0, 1, 1], [], []>} : vector<16x128xf32>, vector<128x32xf32>, vector<16x32xf32> -> vector<16x32xf32>
    %c0_47 = arith.constant 0 : index
    %c0_48 = arith.constant 0 : index
    %104 = vector.load %arg13[%c0_47, %c0_48] : memref<1x32xf32, #tpu.memory_space<vmem>>, vector<1x32xf32>
    %105 = vector.broadcast %104 : vector<1x32xf32> to vector<16x32xf32>
    %106 = arith.addf %103, %105 : vector<16x32xf32>
    %107 = arith.addf %64, %106 : vector<16x32xf32>
    %c0_49 = arith.constant 0 : index
    %c0_50 = arith.constant 0 : index
    %108 = vector.load %arg16[%c0_49, %c0_50] : memref<16x32xf32, #tpu.memory_space<vmem>>, vector<16x32xf32>
    tpu.vector_store %arg16[%c0_49, %c0_50], %107 {strides = array<i32>} : memref<16x32xf32, #tpu.memory_space<vmem>>, vector<16x32xf32>,
    return
  }
  func.func @transform_0(%arg0: i32) -> (i32, i32) {
    %c0_i32 = arith.constant 0 : i32
    %c0_i32_0 = arith.constant 0 : i32
    %c0_i32_1 = arith.constant 0 : i32
    return %c0_i32, %c0_i32_0 : i32, i32
  }
  func.func @transform_1(%arg0: i32) -> (i32, i32) {
    %c0_i32 = arith.constant 0 : i32
    %c0_i32_0 = arith.constant 0 : i32
    %c0_i32_1 = arith.constant 0 : i32
    return %c0_i32, %c0_i32_0 : i32, i32
  }
  func.func @transform_2(%arg0: i32) -> (i32, i32) {
    %c0_i32 = arith.constant 0 : i32
    %c0_i32_0 = arith.constant 0 : i32
    %c0_i32_1 = arith.constant 0 : i32
    return %c0_i32, %c0_i32_0 : i32, i32
  }
  func.func @transform_3(%arg0: i32) -> (i32, i32) {
    %c0_i32 = arith.constant 0 : i32
    %c0_i32_0 = arith.constant 0 : i32
    %c0_i32_1 = arith.constant 0 : i32
    return %c0_i32, %c0_i32_0 : i32, i32
  }
  func.func @transform_4(%arg0: i32) -> (i32, i32) {
    %c0_i32 = arith.constant 0 : i32
    %c0_i32_0 = arith.constant 0 : i32
    %c0_i32_1 = arith.constant 0 : i32
    return %c0_i32, %c0_i32_0 : i32, i32
  }
  func.func @transform_5(%arg0: i32) -> (i32, i32) {
    %c0_i32 = arith.constant 0 : i32
    %c0_i32_0 = arith.constant 0 : i32
    %c0_i32_1 = arith.constant 0 : i32
    return %c0_i32, %c0_i32_0 : i32, i32
  }
  func.func @transform_6(%arg0: i32) -> (i32, i32) {
    %c0_i32 = arith.constant 0 : i32
    %c0_i32_0 = arith.constant 0 : i32
    %c0_i32_1 = arith.constant 0 : i32
    return %c0_i32, %c0_i32_0 : i32, i32
  }
  func.func @transform_7(%arg0: i32) -> (i32, i32) {
    %c0_i32 = arith.constant 0 : i32
    %c0_i32_0 = arith.constant 0 : i32
    %c0_i32_1 = arith.constant 0 : i32
    return %c0_i32, %c0_i32_0 : i32, i32
  }
  func.func @transform_8(%arg0: i32) -> (i32, i32) {
    %c0_i32 = arith.constant 0 : i32
    %c0_i32_0 = arith.constant 0 : i32
    %c0_i32_1 = arith.constant 0 : i32
    return %c0_i32, %c0_i32_0 : i32, i32
  }
  func.func @transform_9(%arg0: i32) -> (i32, i32) {
    %c0_i32 = arith.constant 0 : i32
    %c0_i32_0 = arith.constant 0 : i32
    %c0_i32_1 = arith.constant 0 : i32
    return %c0_i32, %c0_i32_0 : i32, i32
  }
  func.func @transform_10(%arg0: i32) -> (i32, i32) {
    %c0_i32 = arith.constant 0 : i32
    %c0_i32_0 = arith.constant 0 : i32
    %c0_i32_1 = arith.constant 0 : i32
    return %c0_i32, %c0_i32_0 : i32, i32
  }
  func.func @transform_11(%arg0: i32) -> (i32, i32) {
    %c0_i32 = arith.constant 0 : i32
    %c0_i32_0 = arith.constant 0 : i32
    %c0_i32_1 = arith.constant 0 : i32
    return %c0_i32, %c0_i32_0 : i32, i32
  }
  func.func @transform_12(%arg0: i32) -> (i32, i32) {
    %c0_i32 = arith.constant 0 : i32
    %c0_i32_0 = arith.constant 0 : i32
    %c0_i32_1 = arith.constant 0 : i32
    return %c0_i32, %c0_i32_0 : i32, i32
  }
  func.func @transform_13(%arg0: i32) -> (i32, i32) {
    %c0_i32 = arith.constant 0 : i32
    %c0_i32_0 = arith.constant 0 : i32
    %c0_i32_1 = arith.constant 0 : i32
    return %c0_i32, %c0_i32_0 : i32, i32
  }
  func.func @transform_14(%arg0: i32) -> (i32, i32) {
    %c0_i32 = arith.constant 0 : i32
    %c0_i32_0 = arith.constant 0 : i32
    %c0_i32_1 = arith.constant 0 : i32
    return %c0_i32, %c0_i32_0 : i32, i32
  }
  func.func @transform_15(%arg0: i32) -> (i32, i32) {
    %c0_i32 = arith.constant 0 : i32
    %c0_i32_0 = arith.constant 0 : i32
    %c0_i32_1 = arith.constant 0 : i32
    return %c0_i32, %c0_i32_0 : i32, i32
  }
}

</mosaic_0001>

<llo_original>
// kernel: tpu_custom_call.1
$region0: #{tpu_custom_call.1}
  #allocation0 [shape = 'u32[]', space=smem, size = 0x4, offset = 0x4, fixed_abs, tag = 'smem constant byte address 0x4 - core index']
  #allocation1 [shape = 'u32[144,128]{1,0:T(1,128)}', space=vmem, size = 0x12000, scoped, tag = 'internal scratch']
  %s0 = inlined_call_operand.vmem [shape: f32[16,32], index: 0, kind: input, shape index: {}]
  %s1 = inlined_call_operand.vmem [shape: f32[1,32], index: 1, kind: input, shape index: {}]
  %s2 = inlined_call_operand.vmem [shape: f32[1,32], index: 2, kind: input, shape index: {}]
  %s3 = inlined_call_operand.vmem [shape: f32[32,96], index: 3, kind: input, shape index: {}]
  %s4 = inlined_call_operand.vmem [shape: f32[1,96], index: 4, kind: input, shape index: {}]
  %s5 = inlined_call_operand.vmem [shape: f32[32,32], index: 5, kind: input, shape index: {}]
  %s6 = inlined_call_operand.vmem [shape: f32[1,32], index: 6, kind: input, shape index: {}]
  %s7 = inlined_call_operand.vmem [shape: f32[1,32], index: 7, kind: input, shape index: {}]
  %s8 = inlined_call_operand.vmem [shape: f32[1,32], index: 8, kind: input, shape index: {}]
  %s9 = inlined_call_operand.vmem [shape: f32[32,128], index: 9, kind: input, shape index: {}]
  %s10 = inlined_call_operand.vmem [shape: f32[1,128], index: 10, kind: input, shape index: {}]
  %s11 = inlined_call_operand.vmem [shape: f32[128,32], index: 11, kind: input, shape index: {}]
  %s12 = inlined_call_operand.vmem [shape: f32[1,32], index: 12, kind: input, shape index: {}]
  %s13 = inlined_call_operand.vmem [shape: f32[64,64], index: 13, kind: input, shape index: {}]
  %s14 = inlined_call_operand.vmem [shape: f32[64,32], index: 14, kind: input, shape index: {}]
  %s15 = inlined_call_operand.hbm [shape: f32[16,32], index: 15, kind: output, shape index: {}]
  %s16 = sld [smem:[#allocation0]]
  $region70: #{tpu_custom_call.1} parent=0
    _
  %s18 = ssub.s32 1, %s16
  %s19 = scalar_select 0, %s18, %s16
  $region1: #{tpu_custom_call.1} parent=0
    #allocation2 [shape = 'u8[8192]{0}', space=vmem, size = 0x2000, scoped, tag = 'output window, operand 0, single buffered']
    #allocation3 [shape = 's32[1]{0}', space=sflag, size = 0x4, scoped, tag = 'scoped memory for tpu_custom_call.1']
    %20 = vsyncpa [#allocation3], 0
    // Predicated region
    $region2: #{tpu_custom_call.1} parent=1 // pred_check
      _
    $region3: #{tpu_custom_call.1} parent=1 // pred_check_branch
      %22 = sbr.rel (0) target = $region5
    $region4: #{tpu_custom_call.1} parent=1 // pred_region
      _
    $region5: #{tpu_custom_call.1} parent=1 // pred_fallthru
      _
    // Predicated region
    $region6: #{tpu_custom_call.1} parent=1 // pred_check
      _
    $region7: #{tpu_custom_call.1} parent=1 // pred_check_branch
      %24 = sbr.rel (0) target = $region9
    $region8: #{tpu_custom_call.1} parent=1 // pred_region
      _
    $region9: #{tpu_custom_call.1} parent=1 // pred_fallthru
      _
    // Predicated region
    $region10: #{tpu_custom_call.1} parent=1 // pred_check
      _
    $region11: #{tpu_custom_call.1} parent=1 // pred_check_branch
      %26 = sbr.rel (0) target = $region13
    $region12: #{tpu_custom_call.1} parent=1 // pred_region
      _
    $region13: #{tpu_custom_call.1} parent=1 // pred_fallthru
      _
    // Predicated region
    $region14: #{tpu_custom_call.1} parent=1 // pred_check
      _
    $region15: #{tpu_custom_call.1} parent=1 // pred_check_branch
      %28 = sbr.rel (0) target = $region17
    $region16: #{tpu_custom_call.1} parent=1 // pred_region
      _
    $region17: #{tpu_custom_call.1} parent=1 // pred_fallthru
      _
    // Predicated region
    $region18: #{tpu_custom_call.1} parent=1 // pred_check
      _
    $region19: #{tpu_custom_call.1} parent=1 // pred_check_branch
      %30 = sbr.rel (0) target = $region21
    $region20: #{tpu_custom_call.1} parent=1 // pred_region
      _
    $region21: #{tpu_custom_call.1} parent=1 // pred_fallthru
      _
    // Predicated region
    $region22: #{tpu_custom_call.1} parent=1 // pred_check
      _
    $region23: #{tpu_custom_call.1} parent=1 // pred_check_branch
      %32 = sbr.rel (0) target = $region25
    $region24: #{tpu_custom_call.1} parent=1 // pred_region
      _
    $region25: #{tpu_custom_call.1} parent=1 // pred_fallthru
      _
    // Predicated region
    $region26: #{tpu_custom_call.1} parent=1 // pred_check
      _
    $region27: #{tpu_custom_call.1} parent=1 // pred_check_branch
      %34 = sbr.rel (0) target = $region29
    $region28: #{tpu_custom_call.1} parent=1 // pred_region
      _
    $region29: #{tpu_custom_call.1} parent=1 // pred_fallthru
      _
    // Predicated region
    $region30: #{tpu_custom_call.1} parent=1 // pred_check
      _
    $region31: #{tpu_custom_call.1} parent=1 // pred_check_branch
      %36 = sbr.rel (0) target = $region33
    $region32: #{tpu_custom_call.1} parent=1 // pred_region
      _
    $region33: #{tpu_custom_call.1} parent=1 // pred_fallthru
      _
    // Predicated region
    $region34: #{tpu_custom_call.1} parent=1 // pred_check
      _
    $region35: #{tpu_custom_call.1} parent=1 // pred_check_branch
      %38 = sbr.rel (0) target = $region37
    $region36: #{tpu_custom_call.1} parent=1 // pred_region
      _
    $region37: #{tpu_custom_call.1} parent=1 // pred_fallthru
      _
    // Predicated region
    $region38: #{tpu_custom_call.1} parent=1 // pred_check
      _
    $region39: #{tpu_custom_call.1} parent=1 // pred_check_branch
      %40 = sbr.rel (0) target = $region41
    $region40: #{tpu_custom_call.1} parent=1 // pred_region
      _
    $region41: #{tpu_custom_call.1} parent=1 // pred_fallthru
      _
    // Predicated region
    $region42: #{tpu_custom_call.1} parent=1 // pred_check
      _
    $region43: #{tpu_custom_call.1} parent=1 // pred_check_branch
      %42 = sbr.rel (0) target = $region45
    $region44: #{tpu_custom_call.1} parent=1 // pred_region
      _
    $region45: #{tpu_custom_call.1} parent=1 // pred_fallthru
      _
    // Predicated region
    $region46: #{tpu_custom_call.1} parent=1 // pred_check
      _
    $region47: #{tpu_custom_call.1} parent=1 // pred_check_branch
      %44 = sbr.rel (0) target = $region49
    $region48: #{tpu_custom_call.1} parent=1 // pred_region
      _
    $region49: #{tpu_custom_call.1} parent=1 // pred_fallthru
      _
    // Predicated region
    $region50: #{tpu_custom_call.1} parent=1 // pred_check
      _
    $region51: #{tpu_custom_call.1} parent=1 // pred_check_branch
      %46 = sbr.rel (0) target = $region53
    $region52: #{tpu_custom_call.1} parent=1 // pred_region
      _
    $region53: #{tpu_custom_call.1} parent=1 // pred_fallthru
      _
    // Predicated region
    $region54: #{tpu_custom_call.1} parent=1 // pred_check
      _
    $region55: #{tpu_custom_call.1} parent=1 // pred_check_branch
      %48 = sbr.rel (0) target = $region57
    $region56: #{tpu_custom_call.1} parent=1 // pred_region
      _
    $region57: #{tpu_custom_call.1} parent=1 // pred_fallthru
      _
    // Predicated region
    $region58: #{tpu_custom_call.1} parent=1 // pred_check
      _
    $region59: #{tpu_custom_call.1} parent=1 // pred_check_branch
      %50 = sbr.rel (0) target = $region61
    $region60: #{tpu_custom_call.1} parent=1 // pred_region
      _
    $region61: #{tpu_custom_call.1} parent=1 // pred_fallthru
      _
    %v51 = vld [vmem:[%s0] sm:$0xff]
    %v52 = vld [vmem:[%s0 + $0x8] sm:$0xff]
    %v53 = vld [vmem:[%s1] sm:$0x1]
    %v54 = vld [vmem:[%s2] sm:$0x1]
    %vm55 = vcmask 261120
    %v56 = vsel %vm55, %v51, 0.0
    %57 = vadd.xlane.f32.xlu0 %v56
    %v58 = vpop.xlane.xlu0 %57
    %v59 = vsel %vm55, %v52, 0.0
    %60 = vadd.xlane.f32.xlu0 %v59
    %v61 = vpop.xlane.xlu0 %60
    %v62 = vrcp.pop 32.0
    %v63 = vmul.f32 %v58, %v62
    %v64 = vmul.f32 %v61, %v62
    %v65 = vsub.f32 %v51, %v63
    %v66 = vsub.f32 %v52, %v64
    %v67 = vmul.f32 %v65, %v65
    %v68 = vmul.f32 %v66, %v66
    %v69 = vsel %vm55, %v67, 0.0
    %70 = vadd.xlane.f32.xlu0 %v69
    %v71 = vpop.xlane.xlu0 %70
    %v72 = vsel %vm55, %v68, 0.0
    %73 = vadd.xlane.f32.xlu0 %v72
    %v74 = vpop.xlane.xlu0 %73
    %v75 = vmul.f32 %v71, %v62
    %v76 = vmul.f32 %v74, %v62
    %v77 = vadd.f32 %v75, 1e-05
    %v78 = vadd.f32 %v76, 1e-05
    %v79 = vrsqrt.pop %v77
    %v80 = vrsqrt.pop %v78
    %v81 = vmul.f32 %v65, %v79
    %v82 = vmul.f32 %v66, %v80
    %v84 = vlaneseq
    %v85 = vshrl.u32 %v84, 7
    %v86 = vsub.s32 0, %v85
    %v87 = vrot.slane %v53, %v86
    %v89 = vmul.f32 %v81, %v87
    %v90 = vmul.f32 %v82, %v87
    %v92 = vlaneseq
    %v93 = vshrl.u32 %v92, 7
    %v94 = vsub.s32 0, %v93
    %v95 = vrot.slane %v54, %v94
    %v97 = vadd.f32 %v89, %v95
    %v98 = vadd.f32 %v90, %v95
    %v99 = vld [vmem:[%s3] sm:$0xff]
    %v100 = vld [vmem:[%s3 + $0x8] sm:$0xff]
    %v101 = vld [vmem:[%s3 + $0x10] sm:$0xff]
    %v102 = vld [vmem:[%s3 + $0x18] sm:$0xff]
    %v103 = vld [vmem:[%s4] sm:$0x1]
    %v105 = vlaneseq
    %v106 = vshrl.u32 %v105, 7
    %v107 = vsub.s32 0, %v106
    %v108 = vrot.slane %v103, %v107
    %v111 = vsel %vm55, %v97, 0
    %v114 = vsel %vm55, %v98, 0
    %116 = vmatprep.subr.mxu0 0.0
    %117 = vmatpush1.msra.mxu0 %v99
    %118 = vmatprep.subr.mxu0 0.0
    %119 = vmatpush1.msra.mxu0 %v100
    %120 = vmatprep.subr.mxu0 0.0
    %121 = vmatpush1.msra.mxu0 %v101
    %122 = vmatprep.subr.mxu0 0.0
    %123 = vmatpush1.msra.mxu0 %v102
    %124 = vmatprep.subr.mxu0 0.0
    %125 = vmatpush1.msra.mxu0 0.0
    %126 = vmatprep.subr.mxu0 0.0
    %127 = vmatpush1.msra.mxu0 0.0
    %128 = vmatprep.subr.mxu0 0.0
    %129 = vmatpush1.msra.mxu0 0.0
    %130 = vmatprep.subr.mxu0 0.0
    %131 = vmatpush1.msra.mxu0 0.0
    %132 = vmatprep.subr.mxu0 0.0
    %133 = vmatpush1.msra.mxu0 0.0
    %134 = vmatprep.subr.mxu0 0.0
    %135 = vmatpush1.msra.mxu0 0.0
    %136 = vmatprep.subr.mxu0 0.0
    %137 = vmatpush1.msra.mxu0 0.0
    %138 = vmatprep.subr.mxu0 0.0
    %139 = vmatpush1.msra.mxu0 0.0
    %140 = vmatprep.subr.mxu0 0.0
    %141 = vmatpush1.msra.mxu0 0.0
    %142 = vmatprep.subr.mxu0 0.0
    %143 = vmatpush1.msra.mxu0 0.0
    %144 = vmatprep.subr.mxu0 0.0
    %145 = vmatpush1.msra.mxu0 0.0
    %146 = vmatprep.subr.mxu0 0.0
    %147 = vmatpush1.msra.mxu0 0.0
    %148 = vmatprep.subr.mxu0 0.0
    %149 = vmatpush1.msra.mxu0 0.0
    %150 = vmatprep.subr.mxu0 0.0
    %151 = vmatpush1.msra.mxu0 0.0
    %152 = vmatprep.subr.mxu0 0.0
    %153 = vmatpush1.msra.mxu0 0.0
    %154 = vmatprep.subr.mxu0 0.0
    %155 = vmatpush1.msra.mxu0 0.0
    %156 = vmatprep.subr.mxu0 0.0
    %157 = vmatpush1.msra.mxu0 0.0
    %158 = vmatprep.subr.mxu0 0.0
    %159 = vmatpush1.msra.mxu0 0.0
    %160 = vmatprep.subr.mxu0 0.0
    %161 = vmatpush1.msra.mxu0 0.0
    %162 = vmatprep.subr.mxu0 0.0
    %163 = vmatpush1.msra.mxu0 0.0
    %164 = vmatprep.subr.mxu0 0.0
    %165 = vmatpush1.msra.mxu0 0.0
    %166 = vmatprep.subr.mxu0 0.0
    %167 = vmatpush1.msra.mxu0 0.0
    %168 = vmatprep.subr.mxu0 0.0
    %169 = vmatpush1.msra.mxu0 0.0
    %170 = vmatprep.subr.mxu0 0.0
    %171 = vmatpush1.msra.mxu0 0.0
    %172 = vmatprep.subr.mxu0 0.0
    %173 = vmatpush1.msra.mxu0 0.0
    %174 = vmatprep.subr.mxu0 0.0
    %175 = vmatpush1.msra.mxu0 0.0
    %176 = vmatprep.subr.mxu0 0.0
    %177 = vmatpush1.msra.mxu0 0.0
    %178 = vmatprep.subr.mxu0 0.0
    %179 = vmatpush1.msra.mxu0 0.0
    %180 = vmatprep.mubr.f32.mxu0 0.0
    %181 = vmatmul.mubr.f32.gmra.mrb[0].mxu0 %v111
    %v182 = vpop.f32.mrb[0].mxu0
    %v183 = vadd.f32 %v108, %v182
    %v184 = vpop.f32.mrb[0].mxu0
    %185 = vmatprep.mubr.f32.mxu0 0.0
    %186 = vmatmul.mubr.f32.gmra.mrb[0].mxu0 %v114
    %v187 = vpop.f32.mrb[0].mxu0
    %v188 = vadd.f32 %v108, %v187
    %v189 = vpop.f32.mrb[0].mxu0
    %190 = vdwg.mxu0
    %v191 = vld [vmem:[%s14] sm:$0xff]
    %v192 = vld [vmem:[%s14 + $0x8] sm:$0xff]
    %v193 = vld [vmem:[%s14 + $0x10] sm:$0xff]
    %v194 = vld [vmem:[%s14 + $0x18] sm:$0xff]
    %v195 = vld [vmem:[%s14 + $0x20] sm:$0xff]
    %v196 = vld [vmem:[%s14 + $0x28] sm:$0xff]
    %v197 = vld [vmem:[%s14 + $0x30] sm:$0xff]
    %v198 = vld [vmem:[%s14 + $0x38] sm:$0xff]
    %207 = vrot.lane.b32.xlu0 %v191, 32
    %v208 = vpop.permute.xlu0 %207
    %209 = vrot.lane.b32.xlu0 %v192, 32
    %v210 = vpop.permute.xlu0 %209
    %211 = vrot.lane.b32.xlu0 %v193, 32
    %v212 = vpop.permute.xlu0 %211
    %213 = vrot.lane.b32.xlu0 %v194, 32
    %v214 = vpop.permute.xlu0 %213
    %215 = vrot.lane.b32.xlu0 %v195, 32
    %v216 = vpop.permute.xlu0 %215
    %217 = vrot.lane.b32.xlu0 %v196, 32
    %v218 = vpop.permute.xlu0 %217
    %219 = vrot.lane.b32.xlu0 %v197, 32
    %v220 = vpop.permute.xlu0 %219
    %221 = vrot.lane.b32.xlu0 %v198, 32
    %v222 = vpop.permute.xlu0 %221
    %v231 = vmul.f32 %v183, %v208
    %v232 = vmul.f32 %v188, %v210
    %v233 = vmul.f32 %v183, %v212
    %v234 = vmul.f32 %v188, %v214
    %v235 = vmul.f32 %v183, %v216
    %v236 = vmul.f32 %v188, %v218
    %v237 = vmul.f32 %v183, %v220
    %v238 = vmul.f32 %v188, %v222
    %239 = vrot.lane.b32.xlu0 %v191, 64
    %v240 = vpop.permute.xlu0 %239
    %241 = vrot.lane.b32.xlu0 %v192, 64
    %v242 = vpop.permute.xlu0 %241
    %243 = vrot.lane.b32.xlu0 %v193, 64
    %v244 = vpop.permute.xlu0 %243
    %245 = vrot.lane.b32.xlu0 %v194, 64
    %v246 = vpop.permute.xlu0 %245
    %247 = vrot.lane.b32.xlu0 %v195, 64
    %v248 = vpop.permute.xlu0 %247
    %249 = vrot.lane.b32.xlu0 %v196, 64
    %v250 = vpop.permute.xlu0 %249
    %251 = vrot.lane.b32.xlu0 %v197, 64
    %v252 = vpop.permute.xlu0 %251
    %253 = vrot.lane.b32.xlu0 %v198, 64
    %v254 = vpop.permute.xlu0 %253
    %v263 = vmul.f32 %v183, %v240
    %v264 = vmul.f32 %v188, %v242
    %v265 = vmul.f32 %v183, %v244
    %v266 = vmul.f32 %v188, %v246
    %v267 = vmul.f32 %v183, %v248
    %v268 = vmul.f32 %v188, %v250
    %v269 = vmul.f32 %v183, %v252
    %v270 = vmul.f32 %v188, %v254
    %v271 = vld [vmem:[%s13] sm:$0xff]
    %v272 = vld [vmem:[%s13 + $0x8] sm:$0xff]
    %v273 = vld [vmem:[%s13 + $0x10] sm:$0xff]
    %v274 = vld [vmem:[%s13 + $0x18] sm:$0xff]
    %v275 = vld [vmem:[%s13 + $0x20] sm:$0xff]
    %v276 = vld [vmem:[%s13 + $0x28] sm:$0xff]
    %v277 = vld [vmem:[%s13 + $0x30] sm:$0xff]
    %v278 = vld [vmem:[%s13 + $0x38] sm:$0xff]
    %287 = vrot.lane.b32.xlu0 %v231, 96
    %v288 = vpop.permute.xlu0 %287
    %289 = vrot.lane.b32.xlu0 %v232, 96
    %v290 = vpop.permute.xlu0 %289
    %291 = vrot.lane.b32.xlu0 %v233, 96
    %v292 = vpop.permute.xlu0 %291
    %293 = vrot.lane.b32.xlu0 %v234, 96
    %v294 = vpop.permute.xlu0 %293
    %295 = vrot.lane.b32.xlu0 %v235, 96
    %v296 = vpop.permute.xlu0 %295
    %297 = vrot.lane.b32.xlu0 %v236, 96
    %v298 = vpop.permute.xlu0 %297
    %299 = vrot.lane.b32.xlu0 %v237, 96
    %v300 = vpop.permute.xlu0 %299
    %301 = vrot.lane.b32.xlu0 %v238, 96
    %v302 = vpop.permute.xlu0 %301
    %v304 = vsel %vm55, %v183, 0
    %v307 = vsel %vm55, %v188, 0
    %v309 = vsel %vm55, %v288, 0
    %v311 = vsel %vm55, %v290, 0
    %v313 = vsel %vm55, %v292, 0
    %v315 = vsel %vm55, %v294, 0
    %v317 = vsel %vm55, %v296, 0
    %v319 = vsel %vm55, %v298, 0
    %v321 = vsel %vm55, %v300, 0
    %v323 = vsel %vm55, %v302, 0
    %325 = vmatprep.subr.mxu0 0.0
    %326 = vmatpush1.xpose.msra.mxu0 %v309
    %327 = vmatprep.subr.mxu0 0.0
    %328 = vmatpush1.xpose.msra.mxu0 %v311
    %329 = vmatprep.subr.mxu0 0.0
    %330 = vmatpush1.xpose.msra.mxu0 %v313
    %331 = vmatprep.subr.mxu0 0.0
    %332 = vmatpush1.xpose.msra.mxu0 %v315
    %333 = vmatprep.subr.mxu0 0.0
    %334 = vmatpush1.xpose.msra.mxu0 %v317
    %335 = vmatprep.subr.mxu0 0.0
    %336 = vmatpush1.xpose.msra.mxu0 %v319
    %337 = vmatprep.subr.mxu0 0.0
    %338 = vmatpush1.xpose.msra.mxu0 %v321
    %339 = vmatprep.subr.mxu0 0.0
    %340 = vmatpush1.xpose.msra.mxu0 %v323
    %341 = vmatprep.subr.mxu0 0.0
    %342 = vmatpush1.xpose.msra.mxu0 0.0
    %343 = vmatprep.subr.mxu0 0.0
    %344 = vmatpush1.xpose.msra.mxu0 0.0
    %345 = vmatprep.subr.mxu0 0.0
    %346 = vmatpush1.xpose.msra.mxu0 0.0
    %347 = vmatprep.subr.mxu0 0.0
    %348 = vmatpush1.xpose.msra.mxu0 0.0
    %349 = vmatprep.subr.mxu0 0.0
    %350 = vmatpush1.xpose.msra.mxu0 0.0
    %351 = vmatprep.subr.mxu0 0.0
    %352 = vmatpush1.xpose.msra.mxu0 0.0
    %353 = vmatprep.subr.mxu0 0.0
    %354 = vmatpush1.xpose.msra.mxu0 0.0
    %355 = vmatprep.subr.mxu0 0.0
    %356 = vmatpush1.xpose.msra.mxu0 0.0
    %357 = vmatprep.subr.mxu0 0.0
    %358 = vmatpush1.xpose.msra.mxu0 0.0
    %359 = vmatprep.subr.mxu0 0.0
    %360 = vmatpush1.xpose.msra.mxu0 0.0
    %361 = vmatprep.subr.mxu0 0.0
    %362 = vmatpush1.xpose.msra.mxu0 0.0
    %363 = vmatprep.subr.mxu0 0.0
    %364 = vmatpush1.xpose.msra.mxu0 0.0
    %365 = vmatprep.subr.mxu0 0.0
    %366 = vmatpush1.xpose.msra.mxu0 0.0
    %367 = vmatprep.subr.mxu0 0.0
    %368 = vmatpush1.xpose.msra.mxu0 0.0
    %369 = vmatprep.subr.mxu0 0.0
    %370 = vmatpush1.xpose.msra.mxu0 0.0
    %371 = vmatprep.subr.mxu0 0.0
    %372 = vmatpush1.xpose.msra.mxu0 0.0
    %373 = vmatprep.subr.mxu0 0.0
    %374 = vmatpush1.xpose.msra.mxu0 0.0
    %375 = vmatprep.subr.mxu0 0.0
    %376 = vmatpush1.xpose.msra.mxu0 0.0
    %377 = vmatprep.subr.mxu0 0.0
    %378 = vmatpush1.xpose.msra.mxu0 0.0
    %379 = vmatprep.subr.mxu0 0.0
    %380 = vmatpush1.xpose.msra.mxu0 0.0
    %381 = vmatprep.subr.mxu0 0.0
    %382 = vmatpush1.xpose.msra.mxu0 0.0
    %383 = vmatprep.subr.mxu0 0.0
    %384 = vmatpush1.xpose.msra.mxu0 0.0
    %385 = vmatprep.subr.mxu0 0.0
    %386 = vmatpush1.xpose.msra.mxu0 0.0
    %387 = vmatprep.subr.mxu0 0.0
    %388 = vmatpush1.xpose.msra.mxu0 0.0
    %389 = vmatprep.mubr.f32.mxu0 0.0
    %390 = vmatmul.mubr.f32.gmra.mrb[0].mxu0 %v304
    %v391 = vpop.f32.mrb[0].mxu0
    %v392 = vadd.f32 %v271, %v391
    %v393 = vpop.f32.mrb[0].mxu0
    %394 = vmatprep.mubr.f32.mxu0 0.0
    %395 = vmatmul.mubr.f32.gmra.mrb[0].mxu0 %v307
    %v396 = vpop.f32.mrb[0].mxu0
    %v397 = vadd.f32 %v272, %v396
    %v398 = vpop.f32.mrb[0].mxu0
    %399 = vmatprep.mubr.f32.mxu0 0.0
    %400 = vmatmul.mubr.f32.gmra.mrb[0].mxu0 %v304
    %v401 = vpop.f32.mrb[0].mxu0
    %v402 = vadd.f32 %v273, %v401
    %v403 = vpop.f32.mrb[0].mxu0
    %404 = vmatprep.mubr.f32.mxu0 0.0
    %405 = vmatmul.mubr.f32.gmra.mrb[0].mxu0 %v307
    %v406 = vpop.f32.mrb[0].mxu0
    %v407 = vadd.f32 %v274, %v406
    %v408 = vpop.f32.mrb[0].mxu0
    %409 = vmatprep.mubr.f32.mxu0 0.0
    %410 = vmatmul.mubr.f32.gmra.mrb[0].mxu0 %v304
    %v411 = vpop.f32.mrb[0].mxu0
    %v412 = vadd.f32 %v275, %v411
    %v413 = vpop.f32.mrb[0].mxu0
    %414 = vmatprep.mubr.f32.mxu0 0.0
    %415 = vmatmul.mubr.f32.gmra.mrb[0].mxu0 %v307
    %v416 = vpop.f32.mrb[0].mxu0
    %v417 = vadd.f32 %v276, %v416
    %v418 = vpop.f32.mrb[0].mxu0
    %419 = vmatprep.mubr.f32.mxu0 0.0
    %420 = vmatmul.mubr.f32.gmra.mrb[0].mxu0 %v304
    %v421 = vpop.f32.mrb[0].mxu0
    %v422 = vadd.f32 %v277, %v421
    %v423 = vpop.f32.mrb[0].mxu0
    %424 = vmatprep.mubr.f32.mxu0 0.0
    %425 = vmatmul.mubr.f32.gmra.mrb[0].mxu0 %v307
    %v426 = vpop.f32.mrb[0].mxu0
    %v427 = vadd.f32 %v278, %v426
    %v428 = vpop.f32.mrb[0].mxu0
    %429 = vdwg.mxu0
    %vm430 = vcmask 523264
    %v431 = vsel %vm430, %v392, -inf
    %432 = vmax.xlane.f32.xlu0 %v431
    %v433 = vpop.xlane.xlu0 %432
    %v434 = vsel %vm430, %v397, -inf
    %435 = vmax.xlane.f32.xlu0 %v434
    %v436 = vpop.xlane.xlu0 %435
    %v437 = vsel %vm430, %v402, -inf
    %438 = vmax.xlane.f32.xlu0 %v437
    %v439 = vpop.xlane.xlu0 %438
    %v440 = vsel %vm430, %v407, -inf
    %441 = vmax.xlane.f32.xlu0 %v440
    %v442 = vpop.xlane.xlu0 %441
    %v443 = vsel %vm430, %v412, -inf
    %444 = vmax.xlane.f32.xlu0 %v443
    %v445 = vpop.xlane.xlu0 %444
    %v446 = vsel %vm430, %v417, -inf
    %447 = vmax.xlane.f32.xlu0 %v446
    %v448 = vpop.xlane.xlu0 %447
    %v449 = vsel %vm430, %v422, -inf
    %450 = vmax.xlane.f32.xlu0 %v449
    %v451 = vpop.xlane.xlu0 %450
    %v452 = vsel %vm430, %v427, -inf
    %453 = vmax.xlane.f32.xlu0 %v452
    %v454 = vpop.xlane.xlu0 %453
    %v455 = vsub.f32 %v392, %v433
    %v456 = vsub.f32 %v397, %v436
    %v457 = vsub.f32 %v402, %v439
    %v458 = vsub.f32 %v407, %v442
    %v459 = vsub.f32 %v412, %v445
    %v460 = vsub.f32 %v417, %v448
    %v461 = vsub.f32 %v422, %v451
    %v462 = vsub.f32 %v427, %v454
    %v463 = vmul.f32 %v455, 1.442695
    %v464 = vpow.pop %v463
    %v465 = vmul.f32 %v456, 1.442695
    %v466 = vpow.pop %v465
    %v467 = vmul.f32 %v457, 1.442695
    %v468 = vpow.pop %v467
    %v469 = vmul.f32 %v458, 1.442695
    %v470 = vpow.pop %v469
    %v471 = vmul.f32 %v459, 1.442695
    %v472 = vpow.pop %v471
    %v473 = vmul.f32 %v460, 1.442695
    %v474 = vpow.pop %v473
    %v475 = vmul.f32 %v461, 1.442695
    %v476 = vpow.pop %v475
    %v477 = vmul.f32 %v462, 1.442695
    %v478 = vpow.pop %v477
    %v479 = vsel %vm430, %v464, 0.0
    %480 = vadd.xlane.f32.xlu0 %v479
    %v481 = vpop.xlane.xlu0 %480
    %v482 = vsel %vm430, %v466, 0.0
    %483 = vadd.xlane.f32.xlu0 %v482
    %v484 = vpop.xlane.xlu0 %483
    %v485 = vsel %vm430, %v468, 0.0
    %486 = vadd.xlane.f32.xlu0 %v485
    %v487 = vpop.xlane.xlu0 %486
    %v488 = vsel %vm430, %v470, 0.0
    %489 = vadd.xlane.f32.xlu0 %v488
    %v490 = vpop.xlane.xlu0 %489
    %v491 = vsel %vm430, %v472, 0.0
    %492 = vadd.xlane.f32.xlu0 %v491
    %v493 = vpop.xlane.xlu0 %492
    %v494 = vsel %vm430, %v474, 0.0
    %495 = vadd.xlane.f32.xlu0 %v494
    %v496 = vpop.xlane.xlu0 %495
    %v497 = vsel %vm430, %v476, 0.0
    %498 = vadd.xlane.f32.xlu0 %v497
    %v499 = vpop.xlane.xlu0 %498
    %v500 = vsel %vm430, %v478, 0.0
    %501 = vadd.xlane.f32.xlu0 %v500
    %v502 = vpop.xlane.xlu0 %501
    %v503 = vrcp.pop %v481
    %v504 = vmul.f32 %v464, %v503
    %v505 = vrcp.pop %v484
    %v506 = vmul.f32 %v466, %v505
    %v507 = vrcp.pop %v487
    %v508 = vmul.f32 %v468, %v507
    %v509 = vrcp.pop %v490
    %v510 = vmul.f32 %v470, %v509
    %v511 = vrcp.pop %v493
    %v512 = vmul.f32 %v472, %v511
    %v513 = vrcp.pop %v496
    %v514 = vmul.f32 %v474, %v513
    %v515 = vrcp.pop %v499
    %v516 = vmul.f32 %v476, %v515
    %v517 = vrcp.pop %v502
    %v518 = vmul.f32 %v478, %v517
    %527 = vrot.lane.b32.xlu0 %v263, 64
    %v528 = vpop.permute.xlu0 %527
    %529 = vrot.lane.b32.xlu0 %v264, 64
    %v530 = vpop.permute.xlu0 %529
    %531 = vrot.lane.b32.xlu0 %v265, 64
    %v532 = vpop.permute.xlu0 %531
    %533 = vrot.lane.b32.xlu0 %v266, 64
    %v534 = vpop.permute.xlu0 %533
    %535 = vrot.lane.b32.xlu0 %v267, 64
    %v536 = vpop.permute.xlu0 %535
    %537 = vrot.lane.b32.xlu0 %v268, 64
    %v538 = vpop.permute.xlu0 %537
    %539 = vrot.lane.b32.xlu0 %v269, 64
    %v540 = vpop.permute.xlu0 %539
    %541 = vrot.lane.b32.xlu0 %v270, 64
    %v542 = vpop.permute.xlu0 %541
    %v552 = vsel %vm430, %v504, 0
    %v555 = vsel %vm430, %v506, 0
    %v558 = vsel %vm430, %v508, 0
    %v561 = vsel %vm430, %v510, 0
    %v564 = vsel %vm430, %v512, 0
    %v567 = vsel %vm430, %v514, 0
    %v570 = vsel %vm430, %v516, 0
    %v573 = vsel %vm430, %v518, 0
    %575 = vmatprep.subr.mxu0 0.0
    %576 = vmatpush1.msra.mxu0 %v528
    %577 = vmatprep.subr.mxu0 0.0
    %578 = vmatpush1.msra.mxu0 %v530
    %579 = vmatprep.subr.mxu0 0.0
    %580 = vmatpush1.msra.mxu0 %v532
    %581 = vmatprep.subr.mxu0 0.0
    %582 = vmatpush1.msra.mxu0 %v534
    %583 = vmatprep.subr.mxu0 0.0
    %584 = vmatpush1.msra.mxu0 %v536
    %585 = vmatprep.subr.mxu0 0.0
    %586 = vmatpush1.msra.mxu0 %v538
    %587 = vmatprep.subr.mxu0 0.0
    %588 = vmatpush1.msra.mxu0 %v540
    %589 = vmatprep.subr.mxu0 0.0
    %590 = vmatpush1.msra.mxu0 %v542
    %591 = vmatprep.subr.mxu0 0.0
    %592 = vmatpush1.msra.mxu0 0.0
    %593 = vmatprep.subr.mxu0 0.0
    %594 = vmatpush1.msra.mxu0 0.0
    %595 = vmatprep.subr.mxu0 0.0
    %596 = vmatpush1.msra.mxu0 0.0
    %597 = vmatprep.subr.mxu0 0.0
    %598 = vmatpush1.msra.mxu0 0.0
    %599 = vmatprep.subr.mxu0 0.0
    %600 = vmatpush1.msra.mxu0 0.0
    %601 = vmatprep.subr.mxu0 0.0
    %602 = vmatpush1.msra.mxu0 0.0
    %603 = vmatprep.subr.mxu0 0.0
    %604 = vmatpush1.msra.mxu0 0.0
    %605 = vmatprep.subr.mxu0 0.0
    %606 = vmatpush1.msra.mxu0 0.0
    %607 = vmatprep.subr.mxu0 0.0
    %608 = vmatpush1.msra.mxu0 0.0
    %609 = vmatprep.subr.mxu0 0.0
    %610 = vmatpush1.msra.mxu0 0.0
    %611 = vmatprep.subr.mxu0 0.0
    %612 = vmatpush1.msra.mxu0 0.0
    %613 = vmatprep.subr.mxu0 0.0
    %614 = vmatpush1.msra.mxu0 0.0
    %615 = vmatprep.subr.mxu0 0.0
    %616 = vmatpush1.msra.mxu0 0.0
    %617 = vmatprep.subr.mxu0 0.0
    %618 = vmatpush1.msra.mxu0 0.0
    %619 = vmatprep.subr.mxu0 0.0
    %620 = vmatpush1.msra.mxu0 0.0
    %621 = vmatprep.subr.mxu0 0.0
    %622 = vmatpush1.msra.mxu0 0.0
    %623 = vmatprep.subr.mxu0 0.0
    %624 = vmatpush1.msra.mxu0 0.0
    %625 = vmatprep.subr.mxu0 0.0
    %626 = vmatpush1.msra.mxu0 0.0
    %627 = vmatprep.subr.mxu0 0.0
    %628 = vmatpush1.msra.mxu0 0.0
    %629 = vmatprep.subr.mxu0 0.0
    %630 = vmatpush1.msra.mxu0 0.0
    %631 = vmatprep.subr.mxu0 0.0
    %632 = vmatpush1.msra.mxu0 0.0
    %633 = vmatprep.subr.mxu0 0.0
    %634 = vmatpush1.msra.mxu0 0.0
    %635 = vmatprep.subr.mxu0 0.0
    %636 = vmatpush1.msra.mxu0 0.0
    %637 = vmatprep.subr.mxu0 0.0
    %638 = vmatpush1.msra.mxu0 0.0
    %639 = vmatprep.mubr.f32.mxu0 0.0
    %640 = vmatmul.mubr.f32.gmra.mrb[0].mxu0 %v552
    %v641 = vpop.f32.mrb[0].mxu0
    %v642 = vadd.f32 0.0, %v641
    %v643 = vpop.f32.mrb[0].mxu0
    %644 = vmatprep.mubr.f32.mxu0 0.0
    %645 = vmatmul.mubr.f32.gmra.mrb[0].mxu0 %v555
    %v646 = vpop.f32.mrb[0].mxu0
    %v647 = vadd.f32 0.0, %v646
    %v648 = vpop.f32.mrb[0].mxu0
    %649 = vmatprep.mubr.f32.mxu0 0.0
    %650 = vmatmul.mubr.f32.gmra.mrb[0].mxu0 %v558
    %v651 = vpop.f32.mrb[0].mxu0
    %v652 = vadd.f32 0.0, %v651
    %v653 = vpop.f32.mrb[0].mxu0
    %654 = vmatprep.mubr.f32.mxu0 0.0
    %655 = vmatmul.mubr.f32.gmra.mrb[0].mxu0 %v561
    %v656 = vpop.f32.mrb[0].mxu0
    %v657 = vadd.f32 0.0, %v656
    %v658 = vpop.f32.mrb[0].mxu0
    %659 = vmatprep.mubr.f32.mxu0 0.0
    %660 = vmatmul.mubr.f32.gmra.mrb[0].mxu0 %v564
    %v661 = vpop.f32.mrb[0].mxu0
    %v662 = vadd.f32 0.0, %v661
    %v663 = vpop.f32.mrb[0].mxu0
    %664 = vmatprep.mubr.f32.mxu0 0.0
    %665 = vmatmul.mubr.f32.gmra.mrb[0].mxu0 %v567
    %v666 = vpop.f32.mrb[0].mxu0
    %v667 = vadd.f32 0.0, %v666
    %v668 = vpop.f32.mrb[0].mxu0
    %669 = vmatprep.mubr.f32.mxu0 0.0
    %670 = vmatmul.mubr.f32.gmra.mrb[0].mxu0 %v570
    %v671 = vpop.f32.mrb[0].mxu0
    %v672 = vadd.f32 0.0, %v671
    %v673 = vpop.f32.mrb[0].mxu0
    %674 = vmatprep.mubr.f32.mxu0 0.0
    %675 = vmatmul.mubr.f32.gmra.mrb[0].mxu0 %v573
    %v676 = vpop.f32.mrb[0].mxu0
    %v677 = vadd.f32 0.0, %v676
    %v678 = vpop.f32.mrb[0].mxu0
    %679 = vdwg.mxu0
    %v680 = vadd.f32 %v642, %v652
    %v681 = vadd.f32 %v647, %v657
    %v682 = vadd.f32 %v680, %v662
    %v683 = vadd.f32 %v681, %v667
    %v684 = vadd.f32 %v682, %v672
    %v685 = vadd.f32 %v683, %v677
    %v686 = vld [vmem:[%s5] sm:$0xff]
    %v687 = vld [vmem:[%s5 + $0x8] sm:$0xff]
    %v688 = vld [vmem:[%s5 + $0x10] sm:$0xff]
    %v689 = vld [vmem:[%s5 + $0x18] sm:$0xff]
    %v690 = vld [vmem:[%s6] sm:$0x1]
    %v692 = vlaneseq
    %v693 = vshrl.u32 %v692, 7
    %v694 = vsub.s32 0, %v693
    %v695 = vrot.slane %v690, %v694
    %v698 = vsel %vm55, %v684, 0
    %v701 = vsel %vm55, %v685, 0
    %703 = vmatprep.subr.mxu0 0.0
    %704 = vmatpush1.msra.mxu0 %v686
    %705 = vmatprep.subr.mxu0 0.0
    %706 = vmatpush1.msra.mxu0 %v687
    %707 = vmatprep.subr.mxu0 0.0
    %708 = vmatpush1.msra.mxu0 %v688
    %709 = vmatprep.subr.mxu0 0.0
    %710 = vmatpush1.msra.mxu0 %v689
    %711 = vmatprep.subr.mxu0 0.0
    %712 = vmatpush1.msra.mxu0 0.0
    %713 = vmatprep.subr.mxu0 0.0
    %714 = vmatpush1.msra.mxu0 0.0
    %715 = vmatprep.subr.mxu0 0.0
    %716 = vmatpush1.msra.mxu0 0.0
    %717 = vmatprep.subr.mxu0 0.0
    %718 = vmatpush1.msra.mxu0 0.0
    %719 = vmatprep.subr.mxu0 0.0
    %720 = vmatpush1.msra.mxu0 0.0
    %721 = vmatprep.subr.mxu0 0.0
    %722 = vmatpush1.msra.mxu0 0.0
    %723 = vmatprep.subr.mxu0 0.0
    %724 = vmatpush1.msra.mxu0 0.0
    %725 = vmatprep.subr.mxu0 0.0
    %726 = vmatpush1.msra.mxu0 0.0
    %727 = vmatprep.subr.mxu0 0.0
    %728 = vmatpush1.msra.mxu0 0.0
    %729 = vmatprep.subr.mxu0 0.0
    %730 = vmatpush1.msra.mxu0 0.0
    %731 = vmatprep.subr.mxu0 0.0
    %732 = vmatpush1.msra.mxu0 0.0
    %733 = vmatprep.subr.mxu0 0.0
    %734 = vmatpush1.msra.mxu0 0.0
    %735 = vmatprep.subr.mxu0 0.0
    %736 = vmatpush1.msra.mxu0 0.0
    %737 = vmatprep.subr.mxu0 0.0
    %738 = vmatpush1.msra.mxu0 0.0
    %739 = vmatprep.subr.mxu0 0.0
    %740 = vmatpush1.msra.mxu0 0.0
    %741 = vmatprep.subr.mxu0 0.0
    %742 = vmatpush1.msra.mxu0 0.0
    %743 = vmatprep.subr.mxu0 0.0
    %744 = vmatpush1.msra.mxu0 0.0
    %745 = vmatprep.subr.mxu0 0.0
    %746 = vmatpush1.msra.mxu0 0.0
    %747 = vmatprep.subr.mxu0 0.0
    %748 = vmatpush1.msra.mxu0 0.0
    %749 = vmatprep.subr.mxu0 0.0
    %750 = vmatpush1.msra.mxu0 0.0
    %751 = vmatprep.subr.mxu0 0.0
    %752 = vmatpush1.msra.mxu0 0.0
    %753 = vmatprep.subr.mxu0 0.0
    %754 = vmatpush1.msra.mxu0 0.0
    %755 = vmatprep.subr.mxu0 0.0
    %756 = vmatpush1.msra.mxu0 0.0
    %757 = vmatprep.subr.mxu0 0.0
    %758 = vmatpush1.msra.mxu0 0.0
    %759 = vmatprep.subr.mxu0 0.0
    %760 = vmatpush1.msra.mxu0 0.0
    %761 = vmatprep.subr.mxu0 0.0
    %762 = vmatpush1.msra.mxu0 0.0
    %763 = vmatprep.subr.mxu0 0.0
    %764 = vmatpush1.msra.mxu0 0.0
    %765 = vmatprep.subr.mxu0 0.0
    %766 = vmatpush1.msra.mxu0 0.0
    %767 = vmatprep.mubr.f32.mxu0 0.0
    %768 = vmatmul.mubr.f32.gmra.mrb[0].mxu0 %v698
    %v769 = vpop.f32.mrb[0].mxu0
    %v770 = vadd.f32 %v695, %v769
    %v771 = vpop.f32.mrb[0].mxu0
    %772 = vmatprep.mubr.f32.mxu0 0.0
    %773 = vmatmul.mubr.f32.gmra.mrb[0].mxu0 %v701
    %v774 = vpop.f32.mrb[0].mxu0
    %v775 = vadd.f32 %v695, %v774
    %v776 = vpop.f32.mrb[0].mxu0
    %777 = vdwg.mxu0
    %v778 = vadd.f32 %v51, %v770
    %v779 = vadd.f32 %v52, %v775
    %v780 = vld [vmem:[%s7] sm:$0x1]
    %v781 = vld [vmem:[%s8] sm:$0x1]
    %v782 = vsel %vm55, %v778, 0.0
    %783 = vadd.xlane.f32.xlu0 %v782
    %v784 = vpop.xlane.xlu0 %783
    %v785 = vsel %vm55, %v779, 0.0
    %786 = vadd.xlane.f32.xlu0 %v785
    %v787 = vpop.xlane.xlu0 %786
    %v788 = vmul.f32 %v784, %v62
    %v789 = vmul.f32 %v787, %v62
    %v790 = vsub.f32 %v778, %v788
    %v791 = vsub.f32 %v779, %v789
    %v792 = vmul.f32 %v790, %v790
    %v793 = vmul.f32 %v791, %v791
    %v794 = vsel %vm55, %v792, 0.0
    %795 = vadd.xlane.f32.xlu0 %v794
    %v796 = vpop.xlane.xlu0 %795
    %v797 = vsel %vm55, %v793, 0.0
    %798 = vadd.xlane.f32.xlu0 %v797
    %v799 = vpop.xlane.xlu0 %798
    %v800 = vmul.f32 %v796, %v62
    %v801 = vmul.f32 %v799, %v62
    %v802 = vadd.f32 %v800, 1e-05
    %v803 = vadd.f32 %v801, 1e-05
    %v804 = vrsqrt.pop %v802
    %v805 = vrsqrt.pop %v803
    %v806 = vmul.f32 %v790, %v804
    %v807 = vmul.f32 %v791, %v805
    %v809 = vlaneseq
    %v810 = vshrl.u32 %v809, 7
    %v811 = vsub.s32 0, %v810
    %v812 = vrot.slane %v780, %v811
    %v814 = vmul.f32 %v806, %v812
    %v815 = vmul.f32 %v807, %v812
    %v817 = vlaneseq
    %v818 = vshrl.u32 %v817, 7
    %v819 = vsub.s32 0, %v818
    %v820 = vrot.slane %v781, %v819
    %v822 = vadd.f32 %v814, %v820
    %v823 = vadd.f32 %v815, %v820
    %v824 = vld [vmem:[%s9] sm:$0xff]
    %v825 = vld [vmem:[%s9 + $0x8] sm:$0xff]
    %v826 = vld [vmem:[%s9 + $0x10] sm:$0xff]
    %v827 = vld [vmem:[%s9 + $0x18] sm:$0xff]
    %v828 = vld [vmem:[%s10] sm:$0x1]
    %v830 = vlaneseq
    %v831 = vshrl.u32 %v830, 7
    %v832 = vsub.s32 0, %v831
    %v833 = vrot.slane %v828, %v832
    %v836 = vsel %vm55, %v822, 0
    %v839 = vsel %vm55, %v823, 0
    %841 = vmatprep.subr.mxu0 0.0
    %842 = vmatpush1.msra.mxu0 %v824
    %843 = vmatprep.subr.mxu0 0.0
    %844 = vmatpush1.msra.mxu0 %v825
    %845 = vmatprep.subr.mxu0 0.0
    %846 = vmatpush1.msra.mxu0 %v826
    %847 = vmatprep.subr.mxu0 0.0
    %848 = vmatpush1.msra.mxu0 %v827
    %849 = vmatprep.subr.mxu0 0.0
    %850 = vmatpush1.msra.mxu0 0.0
    %851 = vmatprep.subr.mxu0 0.0
    %852 = vmatpush1.msra.mxu0 0.0
    %853 = vmatprep.subr.mxu0 0.0
    %854 = vmatpush1.msra.mxu0 0.0
    %855 = vmatprep.subr.mxu0 0.0
    %856 = vmatpush1.msra.mxu0 0.0
    %857 = vmatprep.subr.mxu0 0.0
    %858 = vmatpush1.msra.mxu0 0.0
    %859 = vmatprep.subr.mxu0 0.0
    %860 = vmatpush1.msra.mxu0 0.0
    %861 = vmatprep.subr.mxu0 0.0
    %862 = vmatpush1.msra.mxu0 0.0
    %863 = vmatprep.subr.mxu0 0.0
    %864 = vmatpush1.msra.mxu0 0.0
    %865 = vmatprep.subr.mxu0 0.0
    %866 = vmatpush1.msra.mxu0 0.0
    %867 = vmatprep.subr.mxu0 0.0
    %868 = vmatpush1.msra.mxu0 0.0
    %869 = vmatprep.subr.mxu0 0.0
    %870 = vmatpush1.msra.mxu0 0.0
    %871 = vmatprep.subr.mxu0 0.0
    %872 = vmatpush1.msra.mxu0 0.0
    %873 = vmatprep.subr.mxu0 0.0
    %874 = vmatpush1.msra.mxu0 0.0
    %875 = vmatprep.subr.mxu0 0.0
    %876 = vmatpush1.msra.mxu0 0.0
    %877 = vmatprep.subr.mxu0 0.0
    %878 = vmatpush1.msra.mxu0 0.0
    %879 = vmatprep.subr.mxu0 0.0
    %880 = vmatpush1.msra.mxu0 0.0
    %881 = vmatprep.subr.mxu0 0.0
    %882 = vmatpush1.msra.mxu0 0.0
    %883 = vmatprep.subr.mxu0 0.0
    %884 = vmatpush1.msra.mxu0 0.0
    %885 = vmatprep.subr.mxu0 0.0
    %886 = vmatpush1.msra.mxu0 0.0
    %887 = vmatprep.subr.mxu0 0.0
    %888 = vmatpush1.msra.mxu0 0.0
    %889 = vmatprep.subr.mxu0 0.0
    %890 = vmatpush1.msra.mxu0 0.0
    %891 = vmatprep.subr.mxu0 0.0
    %892 = vmatpush1.msra.mxu0 0.0
    %893 = vmatprep.subr.mxu0 0.0
    %894 = vmatpush1.msra.mxu0 0.0
    %895 = vmatprep.subr.mxu0 0.0
    %896 = vmatpush1.msra.mxu0 0.0
    %897 = vmatprep.subr.mxu0 0.0
    %898 = vmatpush1.msra.mxu0 0.0
    %899 = vmatprep.subr.mxu0 0.0
    %900 = vmatpush1.msra.mxu0 0.0
    %901 = vmatprep.subr.mxu0 0.0
    %902 = vmatpush1.msra.mxu0 0.0
    %903 = vmatprep.subr.mxu0 0.0
    %904 = vmatpush1.msra.mxu0 0.0
    %905 = vmatprep.mubr.f32.mxu0 0.0
    %906 = vmatmul.mubr.f32.gmra.mrb[0].mxu0 %v836
    %v907 = vpop.f32.mrb[0].mxu0
    %v908 = vadd.f32 %v833, %v907
    %v909 = vpop.f32.mrb[0].mxu0
    %910 = vmatprep.mubr.f32.mxu0 0.0
    %911 = vmatmul.mubr.f32.gmra.mrb[0].mxu0 %v839
    %v912 = vpop.f32.mrb[0].mxu0
    %v913 = vadd.f32 %v833, %v912
    %v914 = vpop.f32.mrb[0].mxu0
    %915 = vdwg.mxu0
    %v916 = vmul.f32 %v908, 0.5
    %v917 = vmul.f32 %v913, 0.5
    %v918 = vmul.f32 %v908, 0.70710677
    %v919 = vmul.f32 %v913, 0.70710677
    %v920 = verf.f32.pop %v918
    %v921 = verf.f32.pop %v919
    %v922 = vadd.f32 %v920, 1.0
    %v923 = vadd.f32 %v921, 1.0
    %v924 = vmul.f32 %v916, %v922
    %v925 = vmul.f32 %v917, %v923
    %v926 = vld [vmem:[%s11] sm:$0xff]
    %v927 = vld [vmem:[%s11 + $0x8] sm:$0xff]
    %v928 = vld [vmem:[%s11 + $0x10] sm:$0xff]
    %v929 = vld [vmem:[%s11 + $0x18] sm:$0xff]
    %v930 = vld [vmem:[%s11 + $0x20] sm:$0xff]
    %v931 = vld [vmem:[%s11 + $0x28] sm:$0xff]
    %v932 = vld [vmem:[%s11 + $0x30] sm:$0xff]
    %v933 = vld [vmem:[%s11 + $0x38] sm:$0xff]
    %v934 = vld [vmem:[%s11 + $0x40] sm:$0xff]
    %v935 = vld [vmem:[%s11 + $0x48] sm:$0xff]
    %v936 = vld [vmem:[%s11 + $0x50] sm:$0xff]
    %v937 = vld [vmem:[%s11 + $0x58] sm:$0xff]
    %v938 = vld [vmem:[%s11 + $0x60] sm:$0xff]
    %v939 = vld [vmem:[%s11 + $0x68] sm:$0xff]
    %v940 = vld [vmem:[%s11 + $0x70] sm:$0xff]
    %v941 = vld [vmem:[%s11 + $0x78] sm:$0xff]
    %v942 = vld [vmem:[%s12] sm:$0x1]
    %v944 = vlaneseq
    %v945 = vshrl.u32 %v944, 7
    %v946 = vsub.s32 0, %v945
    %v947 = vrot.slane %v942, %v946
    %949 = vmatprep.subr.mxu0 0.0
    %950 = vmatpush1.msra.mxu0 %v926
    %951 = vmatprep.subr.mxu0 0.0
    %952 = vmatpush1.msra.mxu0 %v927
    %953 = vmatprep.subr.mxu0 0.0
    %954 = vmatpush1.msra.mxu0 %v928
    %955 = vmatprep.subr.mxu0 0.0
    %956 = vmatpush1.msra.mxu0 %v929
    %957 = vmatprep.subr.mxu0 0.0
    %958 = vmatpush1.msra.mxu0 %v930
    %959 = vmatprep.subr.mxu0 0.0
    %960 = vmatpush1.msra.mxu0 %v931
    %961 = vmatprep.subr.mxu0 0.0
    %962 = vmatpush1.msra.mxu0 %v932
    %963 = vmatprep.subr.mxu0 0.0
    %964 = vmatpush1.msra.mxu0 %v933
    %965 = vmatprep.subr.mxu0 0.0
    %966 = vmatpush1.msra.mxu0 %v934
    %967 = vmatprep.subr.mxu0 0.0
    %968 = vmatpush1.msra.mxu0 %v935
    %969 = vmatprep.subr.mxu0 0.0
    %970 = vmatpush1.msra.mxu0 %v936
    %971 = vmatprep.subr.mxu0 0.0
    %972 = vmatpush1.msra.mxu0 %v937
    %973 = vmatprep.subr.mxu0 0.0
    %974 = vmatpush1.msra.mxu0 %v938
    %975 = vmatprep.subr.mxu0 0.0
    %976 = vmatpush1.msra.mxu0 %v939
    %977 = vmatprep.subr.mxu0 0.0
    %978 = vmatpush1.msra.mxu0 %v940
    %979 = vmatprep.subr.mxu0 0.0
    %980 = vmatpush1.msra.mxu0 %v941
    %981 = vmatprep.subr.mxu0 0.0
    %982 = vmatpush1.msra.mxu0 0.0
    %983 = vmatprep.subr.mxu0 0.0
    %984 = vmatpush1.msra.mxu0 0.0
    %985 = vmatprep.subr.mxu0 0.0
    %986 = vmatpush1.msra.mxu0 0.0
    %987 = vmatprep.subr.mxu0 0.0
    %988 = vmatpush1.msra.mxu0 0.0
    %989 = vmatprep.subr.mxu0 0.0
    %990 = vmatpush1.msra.mxu0 0.0
    %991 = vmatprep.subr.mxu0 0.0
    %992 = vmatpush1.msra.mxu0 0.0
    %993 = vmatprep.subr.mxu0 0.0
    %994 = vmatpush1.msra.mxu0 0.0
    %995 = vmatprep.subr.mxu0 0.0
    %996 = vmatpush1.msra.mxu0 0.0
    %997 = vmatprep.subr.mxu0 0.0
    %998 = vmatpush1.msra.mxu0 0.0
    %999 = vmatprep.subr.mxu0 0.0
    %1000 = vmatpush1.msra.mxu0 0.0
    %1001 = vmatprep.subr.mxu0 0.0
    %1002 = vmatpush1.msra.mxu0 0.0
    %1003 = vmatprep.subr.mxu0 0.0
    %1004 = vmatpush1.msra.mxu0 0.0
    %1005 = vmatprep.subr.mxu0 0.0
    %1006 = vmatpush1.msra.mxu0 0.0
    %1007 = vmatprep.subr.mxu0 0.0
    %1008 = vmatpush1.msra.mxu0 0.0
    %1009 = vmatprep.subr.mxu0 0.0
    %1010 = vmatpush1.msra.mxu0 0.0
    %1011 = vmatprep.subr.mxu0 0.0
    %1012 = vmatpush1.msra.mxu0 0.0
    %1013 = vmatprep.mubr.f32.mxu0 0.0
    %1014 = vmatmul.mubr.f32.gmra.mrb[0].mxu0 %v924
    %v1015 = vpop.f32.mrb[0].mxu0
    %v1016 = vadd.f32 %v947, %v1015
    %v1017 = vpop.f32.mrb[0].mxu0
    %1018 = vmatprep.mubr.f32.mxu0 0.0
    %1019 = vmatmul.mubr.f32.gmra.mrb[0].mxu0 %v925
    %v1020 = vpop.f32.mrb[0].mxu0
    %v1021 = vadd.f32 %v947, %v1020
    %v1022 = vpop.f32.mrb[0].mxu0
    %1023 = vdwg.mxu0
    %v1024 = vadd.f32 %v778, %v1016
    %v1025 = vadd.f32 %v779, %v1021
    %1026 = vst.msk [vmem:[#allocation2] sm:$0xff] %vm55, %v1024
    %1027 = vst.msk [vmem:[#allocation2 + $0x8] sm:$0xff] %vm55, %v1025
    // Predicated region
    $region62: #{tpu_custom_call.1} parent=1 // pred_check
      _
    $region63: #{tpu_custom_call.1} parent=1 // pred_check_branch
      %1029 = sbr.rel (0) target = $region65
    $region64: #{tpu_custom_call.1} parent=1 // pred_region
      %s1031 = ssub.s32 256, 256
      %1032 = vsyncadd [#allocation3], %s1031
      %s1033 = sshll.u32 [#allocation2], 4
      %s1034 = int_to_ptr.vmem [resolvable:$true] %s1033
      %1039 = dma.vmem_to_hbm [thread:$0]  %s1034, 256, %s15, [#allocation3], 128, 128, 8
    $region65: #{tpu_custom_call.1} parent=1 // pred_fallthru
      _
    // Predicated region
    $region66: #{tpu_custom_call.1} parent=1 // pred_check
      _
    $region67: #{tpu_custom_call.1} parent=1 // pred_check_branch
      %1041 = sbr.rel (0) target = $region69
    $region68: #{tpu_custom_call.1} parent=1 // pred_region
      %1042 = dma.done [#allocation3], 256
    $region69: #{tpu_custom_call.1} parent=1 // pred_fallthru
      _
    %1043 = vsyncpa [#allocation3], 1

</llo_original>
